<compile_context>
chip_gen: v5e
topology: v5e:2x2
jax: 0.10.0
libtpu: 0.0.40
codegen_flags: <defaults>
</compile_context>

<pallas_src>
import jax
import jax.numpy as jnp
from jax.experimental import pallas as pl
from jax.experimental.pallas import tpu as pltpu


_TARGET_BLOCK_BYTES = 4 * 1024 * 1024      # ~4 MiB per block
_VMEM_LIMIT_BYTES = 32 * 1024 * 1024       # safe on every TPU generation
_LANE_CANDIDATES = (8192, 4096, 2048, 1024, 512, 256, 128)


def _copy_kernel(x_ref, o_ref):
    # Identity copy of the current block (pure DMA-bound kernel).
    o_ref[...] = x_ref[...]


def _round_up(x: int, m: int) -> int:
    return ((x + m - 1) // m) * m


def _flat_copy_dense(x: jax.Array, total: int, itemsize: int, dtype,
                     donate: bool) -> jax.Array:
    """Copy `total` elements via a sublane/lane-dense (rows, lane) layout."""
    lane = 128
    for cand in _LANE_CANDIDATES:
        if total % cand == 0 and (total // cand) >= 8:
            lane = cand
            break
    rows = total // lane
    x2d = x.reshape(rows, lane)  # metadata-only reshape

    budget_rows = max(8, _TARGET_BLOCK_BYTES // (lane * itemsize))
    if rows <= budget_rows:
        block_rows = rows                              # full extent (always legal)
    else:
        block_rows = max(8, (budget_rows // 8) * 8)    # multiple of 8

    grid = (pl.cdiv(rows, block_rows),)
    return pl.pallas_call(
        _copy_kernel,
        out_shape=jax.ShapeDtypeStruct((rows, lane), dtype),
        grid_spec=pltpu.PrefetchScalarGridSpec(
            num_scalar_prefetch=0,
            grid=grid,
            in_specs=[pl.BlockSpec((block_rows, lane), lambda i: (i, 0))],
            out_specs=pl.BlockSpec((block_rows, lane), lambda i: (i, 0)),
        ),
        compiler_params=pltpu.CompilerParams(
            dimension_semantics=("parallel",),
            vmem_limit_bytes=_VMEM_LIMIT_BYTES,
        ),
        input_output_aliases=({0: 0} if donate else {}),
        cost_estimate=pl.CostEstimate(
            flops=0, transcendentals=0, bytes_accessed=2 * total * itemsize),
    )(x2d)


def _flat_copy_batch2d(x2d: jax.Array, n: int, f: int, itemsize: int,
                       dtype, total: int, donate: bool) -> jax.Array:
    """Fallback for totals not divisible by 128: tile (N, F), masked tails."""
    f_pad = _round_up(f, 128)

    block_n = n if n <= 8 else 8
    budget_f = max(128, (_TARGET_BLOCK_BYTES // (block_n * itemsize)) // 128 * 128)
    block_f = min(f_pad, budget_f)
    if n > 8 and block_f >= f_pad:
        budget_n = max(8, (_TARGET_BLOCK_BYTES // (block_f * itemsize)) // 8 * 8)
        block_n = n if budget_n >= n else budget_n

    grid = (pl.cdiv(n, block_n), pl.cdiv(f, block_f))
    return pl.pallas_call(
        _copy_kernel,
        out_shape=jax.ShapeDtypeStruct((n, f), dtype),
        grid_spec=pltpu.PrefetchScalarGridSpec(
            num_scalar_prefetch=0,
            grid=grid,
            in_specs=[pl.BlockSpec((block_n, block_f), lambda i, j: (i, j))],
            out_specs=pl.BlockSpec((block_n, block_f), lambda i, j: (i, j)),
        ),
        compiler_params=pltpu.CompilerParams(
            dimension_semantics=("parallel", "parallel"),
            vmem_limit_bytes=_VMEM_LIMIT_BYTES,
        ),
        input_output_aliases=({0: 0} if donate else {}),
        cost_estimate=pl.CostEstimate(
            flops=0, transcendentals=0, bytes_accessed=2 * total * itemsize),
    )(x2d)


def batch_flatten(x: jax.Array, donate: bool = False) -> jax.Array:
    """Equivalent of torch BatchFlatten: (N, ...) -> (N, prod(...)).

    Set donate=True only when the caller actually donates `x` (e.g. via
    jax.jit donate_argnums); otherwise aliasing forces a defensive HBM copy.
    """
    n = int(x.shape[0])
    f = 1
    for d in x.shape[1:]:
        f *= int(d)
    total = n * f
    dtype = x.dtype
    itemsize = jnp.dtype(dtype).itemsize

    if total % 128 == 0:
        # Lane/sublane-dense flat copy, reshaped back to (N, F) for free.
        out2d = _flat_copy_dense(x, total, itemsize, dtype, donate)
        return out2d.reshape(n, f)
    # Non-128-aligned total: tiled (N, F) copy with masked tail blocks
    # (never requests a full (N, F) block, so no VMEM blowup for large F).
    x2d = x.reshape(n, f)
    return _flat_copy_batch2d(x2d, n, f, itemsize, dtype, total, donate)


if __name__ == "__main__":
    key = jax.random.PRNGKey(0)

    # Small NCHW input consistent with the module's usage.
    x = jax.random.normal(key, (2, 4, 16, 16), dtype=jnp.float32)
    y = jax.block_until_ready(batch_flatten(x))
    ref = x.reshape(x.shape[0], -1)
    assert y.shape == (2, 4 * 16 * 16), y.shape
    assert y.dtype == x.dtype
    assert jnp.array_equal(y, ref)

    # Exercise the non-128-aligned fallback path as well.
    x_odd = jax.random.normal(key, (2, 3, 5, 7), dtype=jnp.float32)
    y_odd = jax.block_until_ready(batch_flatten(x_odd))
    assert y_odd.shape == (2, 3 * 5 * 7)
    assert jnp.array_equal(y_odd, x_odd.reshape(2, -1))

    # bf16 path (sub-32-bit packing) on a sequence-style shape.
    x_bf = jax.random.normal(key, (2, 8, 32), dtype=jnp.bfloat16)
    y_bf = jax.block_until_ready(batch_flatten(x_bf))
    assert y_bf.shape == (2, 8 * 32)
    assert jnp.array_equal(y_bf, x_bf.reshape(2, -1))

    print("KERNEL_OK")
</pallas_src>

<mosaic_0001>
module attributes {stable_mosaic.version = 11 : i64} {
  func.func @_copy_kernel(%arg0: i32, %arg1: memref<8x256xf32, #tpu.memory_space<vmem>>, %arg2: memref<8x256xf32, #tpu.memory_space<vmem>>) attributes {dimension_semantics = [#tpu.dimension_semantics<parallel>], iteration_bounds = array<i64: 1>, scalar_prefetch = 0 : i64, scratch_operands = 0 : i64, tpu.core_type = #tpu.core_type<tc>, window_params = [{transform_indices = @transform_0, window_bounds = array<i64: 8, 256>}, {transform_indices = @transform_1, window_bounds = array<i64: 8, 256>}]} {
    %c0 = arith.constant 0 : index
    %c0_0 = arith.constant 0 : index
    %0 = vector.load %arg1[%c0, %c0_0] : memref<8x256xf32, #tpu.memory_space<vmem>>, vector<8x256xf32>
    %c0_1 = arith.constant 0 : index
    %c0_2 = arith.constant 0 : index
    %1 = vector.load %arg2[%c0_1, %c0_2] : memref<8x256xf32, #tpu.memory_space<vmem>>, vector<8x256xf32>
    tpu.vector_store %arg2[%c0_1, %c0_2], %0 {strides = array<i32>} : memref<8x256xf32, #tpu.memory_space<vmem>>, vector<8x256xf32>,
    return
  }
  func.func @transform_0(%arg0: i32) -> (i32, i32) {
    %c0_i32 = arith.constant 0 : i32
    %c0_i32_0 = arith.constant 0 : i32
    return %arg0, %c0_i32 : i32, i32
  }
  func.func @transform_1(%arg0: i32) -> (i32, i32) {
    %c0_i32 = arith.constant 0 : i32
    %c0_i32_0 = arith.constant 0 : i32
    return %arg0, %c0_i32 : i32, i32
  }
}

</mosaic_0001>

<llo_original>
// kernel: tpu_custom_call.1
$region0: #{tpu_custom_call.1}
  #allocation0 [shape = 'u32[]', space=smem, size = 0x4, offset = 0x4, fixed_abs, tag = 'smem constant byte address 0x4 - core index']
  #allocation1 [shape = 'u32[72,128]{1,0:T(1,128)}', space=vmem, size = 0x9000, scoped, tag = 'internal scratch']
  %s0 = inlined_call_operand.hbm [shape: f32[8,256], index: 0, kind: input, shape index: {}]
  %s1 = inlined_call_operand.hbm [shape: f32[8,256], index: 1, kind: output, shape index: {}]
  %s2 = sld [smem:[#allocation0]]
  $region18: #{tpu_custom_call.1} parent=0
    _
  %s4 = ssub.s32 1, %s2
  %s5 = scalar_select 0, %s4, %s2
  $region1: #{tpu_custom_call.1} parent=0
    #allocation2 [shape = 'u8[8192]{0}', space=vmem, size = 0x2000, scoped, tag = 'input window, operand 0, single buffered']
    #allocation3 [shape = 's32[1]{0}', space=sflag, size = 0x4, scoped, tag = 'scoped memory for tpu_custom_call.1']
    #allocation4 [shape = 's32[1]{0}', space=sflag, size = 0x4, scoped, tag = 'scoped memory for tpu_custom_call.1']
    #allocation5 [shape = 'u8[8192]{0}', space=vmem, size = 0x2000, scoped, tag = 'output window, operand 0, single buffered']
    %6 = vsyncpa [#allocation3], 0
    %7 = vsyncpa [#allocation4], 0
    // Predicated region
    $region2: #{tpu_custom_call.1} parent=1 // pred_check
      _
    $region3: #{tpu_custom_call.1} parent=1 // pred_check_branch
      %9 = sbr.rel (0) target = $region5
    $region4: #{tpu_custom_call.1} parent=1 // pred_region
      %11 = vsyncadd [#allocation3], 0
      %s13 = sshll.u32 %s0, 4
      %s14 = int_to_ptr.hbm [resolvable:$true] %s13
      %s15 = sshll.u32 [#allocation2], 4
      %s16 = int_to_ptr.vmem [resolvable:$true] %s15
      %18 = dma.hbm_to_vmem [thread:$0]  %s14, 256, %s16, [#allocation3]
    $region5: #{tpu_custom_call.1} parent=1 // pred_fallthru
      _
    // Predicated region
    $region6: #{tpu_custom_call.1} parent=1 // pred_check
      _
    $region7: #{tpu_custom_call.1} parent=1 // pred_check_branch
      %20 = sbr.rel (0) target = $region9
    $region8: #{tpu_custom_call.1} parent=1 // pred_region
      %22 = dma.done [#allocation3], 256
    $region9: #{tpu_custom_call.1} parent=1 // pred_fallthru
      _
    %v23 = vld [vmem:[#allocation2] sm:$0xff]
    %v24 = vld [vmem:[#allocation2 + $0x8] sm:$0xff]
    %25 = vst [vmem:[#allocation5] sm:$0xff] %v23
    %26 = vst [vmem:[#allocation5 + $0x8] sm:$0xff] %v24
    // Predicated region
    $region10: #{tpu_custom_call.1} parent=1 // pred_check
      _
    $region11: #{tpu_custom_call.1} parent=1 // pred_check_branch
      %28 = sbr.rel (0) target = $region13
    $region12: #{tpu_custom_call.1} parent=1 // pred_region
      %30 = vsyncadd [#allocation4], 0
      %s32 = sshll.u32 [#allocation5], 4
      %s33 = int_to_ptr.vmem [resolvable:$true] %s32
      %s34 = sshll.u32 %s1, 4
      %s35 = int_to_ptr.hbm [resolvable:$true] %s34
      %37 = dma.vmem_to_hbm [thread:$0]  %s33, 256, %s35, [#allocation4]
    $region13: #{tpu_custom_call.1} parent=1 // pred_fallthru
      _
    // Predicated region
    $region14: #{tpu_custom_call.1} parent=1 // pred_check
      _
    $region15: #{tpu_custom_call.1} parent=1 // pred_check_branch
      %39 = sbr.rel (0) target = $region17
    $region16: #{tpu_custom_call.1} parent=1 // pred_region
      %41 = dma.done [#allocation4], 256
    $region17: #{tpu_custom_call.1} parent=1 // pred_fallthru
      _
    %42 = vsyncpa [#allocation3], 1
    %43 = vsyncpa [#allocation4], 1

</llo_original>
